<compile_context>
chip_gen: v7x
topology: tpu7x:2x2x1
jax: 0.10.0
libtpu: 0.0.40
codegen_flags: <defaults>
</compile_context>

<pallas_src>
import functools

import jax
import jax.numpy as jnp
from jax.experimental import pallas as pl
from jax.experimental.pallas import tpu as pltpu

_LANES = 128


def _round_up(v, m):
    return -(-v // m) * m


def _sum_kernel(x_ref, o_ref, *, steps, tm, rows_total, tail_blk, needs_mask):
    k = pl.program_id(1)

    @pl.when(k == 0)
    def _init():
        o_ref[...] = jnp.zeros_like(o_ref)

    blk = pl.program_id(0) * steps + k

    def _accumulate(x):
        # Tree-reduce (tm,128)->(8,128) along whole vregs (no cross-lane
        # shuffles) and add a single vreg into the resident output block.
        o_ref[...] += jnp.sum(x.reshape(tm // 8, 8, _LANES), axis=0)

    if needs_mask:
        # Fast path: fully in-range block, zero masking work.
        @pl.when(blk < tail_blk)
        def _full():
            _accumulate(x_ref[...].astype(o_ref.dtype))

        # Cold path: the (single) partial tail block and any clamped
        # out-of-range blocks of an uneven parallel split.
        @pl.when(blk >= tail_blk)
        def _tail():
            x = x_ref[...].astype(o_ref.dtype)  # cast in VMEM, then mask in f32/i32
            row = jax.lax.broadcasted_iota(jnp.int32, (tm, _LANES), 0)
            x = jnp.where(blk * tm + row < rows_total, x, jnp.zeros_like(x))
            _accumulate(x)
    else:
        _accumulate(x_ref[...].astype(o_ref.dtype))


def _default_num_splits():
    # Two TensorCores per chip only on v7x; on single-TC chips an extra split
    # only adds grid-step boundaries and spurious masking.
    try:
        kind = jax.devices()[0].device_kind.lower()
    except Exception:
        return 1
    return 2 if "v7" in kind else 1


def loss_layer_sum(x, *, tm=None, num_splits=None, min_pallas_elems=1 << 20):
    """Pallas TPU implementation of LossLayer.forward: returns x.sum() (0-d)."""
    n = x.size
    if n == 0:
        return jnp.zeros((), x.dtype)

    # Tiny inputs: pallas_call launch/grid overhead exceeds a fused XLA reduce.
    if n < min_pallas_elems:
        return jnp.sum(x)

    orig_dtype = x.dtype
    if orig_dtype == jnp.bool_:
        x = x.astype(jnp.int8)     # stream 1 B/elem; widened to int32 in-kernel
    elif orig_dtype == jnp.float64:
        x = x.astype(jnp.float32)  # TODO(synk): no f64 on TPU Pallas; accumulate in f32.
    elif orig_dtype in (jnp.int64, jnp.uint64):
        x = x.astype(jnp.int32)    # TODO(synk): torch promotes int sums to int64; TPU uses int32.

    if jnp.issubdtype(x.dtype, jnp.floating):
        acc_dtype = jnp.float32
        out_dtype = jnp.float32 if orig_dtype == jnp.float64 else orig_dtype
    else:
        acc_dtype = jnp.int32
        out_dtype = jnp.int32      # TODO(synk): torch returns int64 for int/bool sums.

    itemsize = x.dtype.itemsize
    sub = max(8, 32 // itemsize)   # min sublane multiple for packed narrow dtypes

    flat = x.reshape(-1)           # free relayout for a contiguous row-major input
    rem = n % _LANES
    if rem:
        # Only non-lane-aligned numel pays a pad; row raggedness is masked in-kernel.
        flat = jnp.pad(flat, (0, _LANES - rem))
    rows_total = flat.shape[0] // _LANES
    slab = flat.reshape(rows_total, _LANES)

    if tm is None:
        # Target ~2 MiB of input bytes per grid step (HBM-streaming regime).
        tm = (2 << 20) // (_LANES * itemsize)
    tm = max(sub, min(int(tm), _round_up(rows_total, sub)))
    tm = _round_up(tm, sub)

    total_blocks = -(-rows_total // tm)
    if num_splits is None:
        num_splits = _default_num_splits()
    num_splits = max(1, min(int(num_splits), total_blocks))
    steps = -(-total_blocks // num_splits)

    partial_tail = rows_total % tm != 0
    oob_blocks = num_splits * steps != total_blocks
    needs_mask = partial_tail or oob_blocks
    # First block index that requires masking.
    tail_blk = total_blocks - 1 if partial_tail else total_blocks
    last_blk = total_blocks - 1

    if oob_blocks:
        # Clamp out-of-range block indices of an uneven split; their contents
        # are fully masked inside the kernel.
        index_map = lambda p, k: (jnp.minimum(p * steps + k, last_blk), 0)
    else:
        index_map = lambda p, k: (p * steps + k, 0)

    kernel = functools.partial(
        _sum_kernel, steps=steps, tm=tm, rows_total=rows_total,
        tail_blk=tail_blk, needs_mask=needs_mask)

    partials = pl.pallas_call(
        kernel,
        out_shape=jax.ShapeDtypeStruct((num_splits * 8, _LANES), acc_dtype),
        grid_spec=pltpu.PrefetchScalarGridSpec(
            num_scalar_prefetch=0,
            grid=(num_splits, steps),
            in_specs=[pl.BlockSpec((tm, _LANES), index_map)],
            out_specs=pl.BlockSpec((8, _LANES), lambda p, k: (p, 0)),
        ),
        # TODO(synk): on v7x verify "parallel" shards the leading axis across
        # both TensorCores; otherwise switch to CORE_PARALLEL semantics.
        compiler_params=pltpu.CompilerParams(
            dimension_semantics=("parallel", "arbitrary"),
        ),
    )(slab)

    # Tiny final combine of the per-split (8,128) partials in plain XLA.
    return jnp.sum(partials).astype(out_dtype)


if __name__ == "__main__":
    key = jax.random.PRNGKey(0)
    x = jax.random.normal(key, (2, 4, 16, 16), dtype=jnp.float32)

    # Force the Pallas path even at this small test shape.
    result = jax.block_until_ready(loss_layer_sum(x, min_pallas_elems=0))
    ref = jnp.sum(x)
    assert result.shape == ()
    assert jnp.allclose(result, ref, atol=1e-3, rtol=1e-5), (result, ref)

    # Ragged numel (not lane-aligned), several grid steps, a partial tail
    # block, and an uneven parallel split with a clamped out-of-range block.
    y = jax.random.normal(jax.random.PRNGKey(1), (3, 5, 17, 19), dtype=jnp.float32)
    r2 = jax.block_until_ready(
        loss_layer_sum(y, tm=8, num_splits=2, min_pallas_elems=0))
    assert jnp.allclose(r2, jnp.sum(y), atol=1e-2, rtol=1e-5), (r2, jnp.sum(y))

    # bool input: streams as int8, widens to int32 in VMEM; result is exact.
    b = jax.random.bernoulli(jax.random.PRNGKey(2), 0.3, (7, 129, 5))
    r3 = jax.block_until_ready(loss_layer_sum(b, min_pallas_elems=0))
    assert int(r3) == int(jnp.sum(b.astype(jnp.int32))), (r3,)

    # Default small-input fast path (no pallas_call for tiny tensors).
    r4 = jax.block_until_ready(loss_layer_sum(x))
    assert jnp.allclose(r4, ref, atol=1e-3, rtol=1e-5)

    print("KERNEL_OK")
</pallas_src>

<mosaic_0001>
module attributes {stable_mosaic.version = 11 : i64} {
  func.func @_sum_kernel(%arg0: i32, %arg1: i32, %arg2: memref<16x128xf32, #tpu.memory_space<vmem>>, %arg3: memref<8x128xf32, #tpu.memory_space<vmem>>) attributes {dimension_semantics = [#tpu.dimension_semantics<parallel>, #tpu.dimension_semantics<arbitrary>], iteration_bounds = array<i64: 1, 1>, scalar_prefetch = 0 : i64, scratch_operands = 0 : i64, tpu.core_type = #tpu.core_type<tc>, window_params = [{transform_indices = @transform_0, window_bounds = array<i64: 16, 128>}, {transform_indices = @transform_1, window_bounds = array<i64: 8, 128>}]} {
    %c0_i32 = arith.constant 0 : i32
    %0 = arith.cmpi eq, %arg1, %c0_i32 : i32
    %1 = arith.extui %0 : i1 to i32
    %c0_i32_0 = arith.constant 0 : i32
    %2 = arith.cmpi ne, %1, %c0_i32_0 : i32
    scf.if %2 {
      %cst_6 = arith.constant 0.000000e+00 : f32
      %9 = vector.broadcast %cst_6 : f32 to vector<8x128xf32>
      %c0_7 = arith.constant 0 : index
      %c0_8 = arith.constant 0 : index
      %10 = vector.load %arg3[%c0_7, %c0_8] : memref<8x128xf32, #tpu.memory_space<vmem>>, vector<8x128xf32>
      tpu.vector_store %arg3[%c0_7, %c0_8], %9 {strides = array<i32>} : memref<8x128xf32, #tpu.memory_space<vmem>>, vector<8x128xf32>,
    } else {
    }
    %c0 = arith.constant 0 : index
    %c0_1 = arith.constant 0 : index
    %3 = vector.load %arg2[%c0, %c0_1] : memref<16x128xf32, #tpu.memory_space<vmem>>, vector<16x128xf32>
    %c0_2 = arith.constant 0 : index
    %c0_3 = arith.constant 0 : index
    %4 = vector.load %arg3[%c0_2, %c0_3] : memref<8x128xf32, #tpu.memory_space<vmem>>, vector<8x128xf32>
    %5 = vector.shape_cast %3 : vector<16x128xf32> to vector<2x8x128xf32>
    %cst = arith.constant dense<0.000000e+00> : vector<8x128xf32>
    %6 = vector.multi_reduction <add>, %5, %cst [0] : vector<2x8x128xf32> to vector<8x128xf32>
    %7 = arith.addf %4, %6 : vector<8x128xf32>
    %c0_4 = arith.constant 0 : index
    %c0_5 = arith.constant 0 : index
    %8 = vector.load %arg3[%c0_4, %c0_5] : memref<8x128xf32, #tpu.memory_space<vmem>>, vector<8x128xf32>
    tpu.vector_store %arg3[%c0_4, %c0_5], %7 {strides = array<i32>} : memref<8x128xf32, #tpu.memory_space<vmem>>, vector<8x128xf32>,
    return
  }
  func.func @transform_0(%arg0: i32, %arg1: i32) -> (i32, i32) {
    %c1_i32 = arith.constant 1 : i32
    %0 = arith.muli %arg0, %c1_i32 : i32
    %1 = arith.addi %0, %arg1 : i32
    %c0_i32 = arith.constant 0 : i32
    %c0_i32_0 = arith.constant 0 : i32
    return %1, %c0_i32 : i32, i32
  }
  func.func @transform_1(%arg0: i32, %arg1: i32) -> (i32, i32) {
    %c0_i32 = arith.constant 0 : i32
    %c0_i32_0 = arith.constant 0 : i32
    return %arg0, %c0_i32 : i32, i32
  }
}

</mosaic_0001>

<llo_original>
// kernel: tpu_custom_call.1
$region0: #{tpu_custom_call.1}
  #allocation0 [shape = 'u32[]', space=smem, size = 0x4, offset = 0x4, fixed_abs, tag = 'smem constant byte address 0x4 - core index']
  #allocation1 [shape = 'u32[144,128]{1,0:T(1,128)}', space=vmem, size = 0x12000, scoped, tag = 'internal scratch']
  %s0 = inlined_call_operand.hbm [shape: f32[16,128], index: 0, kind: input, shape index: {}]
  %s1 = inlined_call_operand.hbm [shape: f32[8,128], index: 1, kind: output, shape index: {}]
  %s2 = sld [smem:[#allocation0]]
  $region22: #{tpu_custom_call.1} parent=0
    _
  %s4 = ssub.s32 1, %s2
  %s5 = scalar_select 0, %s4, %s2
  $region1: #{tpu_custom_call.1} parent=0
    #allocation2 [shape = 'u8[8192]{0}', space=vmem, size = 0x2000, scoped, tag = 'input window, operand 0, single buffered']
    #allocation3 [shape = 's32[1]{0}', space=sflag, size = 0x4, scoped, tag = 'scoped memory for tpu_custom_call.1']
    #allocation4 [shape = 's32[1]{0}', space=sflag, size = 0x4, scoped, tag = 'scoped memory for tpu_custom_call.1']
    #allocation5 [shape = 'u8[4096]{0}', space=vmem, size = 0x1000, scoped, tag = 'output window, operand 0, single buffered']
    %6 = vsyncpa [#allocation3], 0
    %7 = vsyncpa [#allocation4], 0
    // Predicated region
    $region2: #{tpu_custom_call.1} parent=1 // pred_check
      _
    $region3: #{tpu_custom_call.1} parent=1 // pred_check_branch
      %9 = sbr.rel (0) target = $region5
    $region4: #{tpu_custom_call.1} parent=1 // pred_region
      %s10 = sadd.s32 0, 0
      %s11 = smul.u32 2, %s10
      %s13 = ssub.s32 256, 256
      %14 = vsyncadd [#allocation3], %s13
      %s15 = smul.addr %s11, 128
      %s16 = scalar_lea.hbm %s0, %s15
      %s17 = sshll.u32 [#allocation2], 4
      %s18 = int_to_ptr.vmem [resolvable:$true] %s17
      %23 = dma.hbm_to_vmem [thread:$0]  %s16, 256, %s18, [#allocation3], 128, 128, 8
    $region5: #{tpu_custom_call.1} parent=1 // pred_fallthru
      _
    // Predicated region
    $region6: #{tpu_custom_call.1} parent=1 // pred_check
      _
    $region7: #{tpu_custom_call.1} parent=1 // pred_check_branch
      %25 = sbr.rel (0) target = $region9
    $region8: #{tpu_custom_call.1} parent=1 // pred_region
      %26 = dma.done [#allocation3], 256
    $region9: #{tpu_custom_call.1} parent=1 // pred_fallthru
      _
    %s27 = sadd.s32 0, 0
    %s28 = smul.u32 2, %s27
    %p29 = scmp.eq.s32.totalorder 0, 0
    // Predicated region
    $region10: #{tpu_custom_call.1} parent=1 // pred_check
      %p30 = pneg %p29
    $region11: #{tpu_custom_call.1} parent=1 // pred_check_branch
      %32 = sbr.rel (%p30) target = $region13
    $region12: #{tpu_custom_call.1} parent=1 // pred_region
      %33 = vst [vmem:[#allocation5] sm:$0xff] 0.0
    $region13: #{tpu_custom_call.1} parent=1 // pred_fallthru
      _
    %v34 = vld [vmem:[#allocation2] sm:$0xff]
    %v35 = vld [vmem:[#allocation2 + $0x8] sm:$0xff]
    %v36 = vld [vmem:[#allocation5] sm:$0xff]
    %v37 = vadd.f32 %v34, %v35
    %v38 = vadd.f32 %v36, %v37
    %39 = vst [vmem:[#allocation5] sm:$0xff] %v38
    // Predicated region
    $region14: #{tpu_custom_call.1} parent=1 // pred_check
      _
    $region15: #{tpu_custom_call.1} parent=1 // pred_check_branch
      %41 = sbr.rel (0) target = $region17
    $region16: #{tpu_custom_call.1} parent=1 // pred_region
      %s43 = ssub.s32 128, 128
      %44 = vsyncadd [#allocation4], %s43
      %s46 = sshll.u32 [#allocation5], 4
      %s47 = int_to_ptr.vmem [resolvable:$true] %s46
      %49 = dma.vmem_to_hbm [thread:$0]  %s47, 128, %s1, [#allocation4]
    $region17: #{tpu_custom_call.1} parent=1 // pred_fallthru
      _
    // Predicated region
    $region18: #{tpu_custom_call.1} parent=1 // pred_check
      _
    $region19: #{tpu_custom_call.1} parent=1 // pred_check_branch
      %51 = sbr.rel (0) target = $region21
    $region20: #{tpu_custom_call.1} parent=1 // pred_region
      %52 = dma.done [#allocation4], 128
    $region21: #{tpu_custom_call.1} parent=1 // pred_fallthru
      _
    %53 = vsyncpa [#allocation3], 1
    %54 = vsyncpa [#allocation4], 1

</llo_original>
